<compile_context>
chip_gen: v7x
topology: tpu7x:2x2x1
jax: 0.10.0
libtpu: 0.0.40
codegen_flags: <defaults>
</compile_context>

<pallas_src>
import math
from functools import partial

import jax
import jax.numpy as jnp
from jax.experimental import pallas as pl
from jax.experimental.pallas import tpu as pltpu

OUT_PAD = 128       # lane-dense padded class dimension (one full lane row)
NEG_BIG = -1e30     # effectively -inf for padded class logits (exp underflows to 0)


def _nsc_kernel(x_ref, vw_ref, vb_ref, ww_ref, wb_ref, out_ref):
    # x_ref:   (TB, inp)       batch tile of averaged embeddings
    # vw_ref:  (inp, hid)      V.weight pre-transposed
    # vb_ref:  (1, hid)        V.bias
    # ww_ref:  (hid, OUT_PAD)  W.weight pre-transposed, zero-padded on classes
    # wb_ref:  (1, OUT_PAD)    W.bias, padded classes set to NEG_BIG
    # out_ref: (TB, OUT_PAD)   log-probabilities (padded lanes ~ -inf, sliced off outside)
    x = x_ref[...]

    # hidden = relu(V(x) + bias)
    h = jnp.dot(x, vw_ref[...], preferred_element_type=jnp.float32) + vb_ref[...]
    # TODO(synk): dropout(p=0.1) omitted — identity in eval/predict mode.
    h = jnp.maximum(h, 0.0)

    # logits = W(h) + bias   (padded classes: 0-weight cols + NEG_BIG bias)
    logits = jnp.dot(h, ww_ref[...], preferred_element_type=jnp.float32) + wb_ref[...]

    # numerically stable log-softmax over the class axis
    m = jnp.max(logits, axis=-1, keepdims=True)
    shifted = logits - m
    lse = jnp.log(jnp.sum(jnp.exp(shifted), axis=-1, keepdims=True))
    out_ref[...] = (shifted - lse).astype(out_ref.dtype)


def prepare_params(v_w, v_b, w_w, w_b):
    """One-time weight prep (hoisted out of the per-call hot path).

    v_w: (hid, inp)  nn.Linear(inp, hid).weight
    v_b: (hid,)
    w_w: (out, hid)  nn.Linear(hid, out).weight
    w_b: (out,)
    """
    hid, inp = v_w.shape
    out = w_w.shape[0]
    vw_t = jnp.asarray(v_w, jnp.float32).T                         # (inp, hid)
    vb2 = jnp.asarray(v_b, jnp.float32).reshape(1, hid)            # (1, hid)
    ww_t = jnp.asarray(w_w, jnp.float32).T                         # (hid, out)
    ww_pad = jnp.zeros((hid, OUT_PAD), jnp.float32).at[:, :out].set(ww_t)
    wb_pad = (jnp.full((1, OUT_PAD), NEG_BIG, jnp.float32)
              .at[0, :out].set(jnp.asarray(w_b, jnp.float32)))
    return {"vw": vw_t, "vb": vb2, "ww": ww_pad, "wb": wb_pad, "out": out}


@partial(jax.jit, static_argnames=("out",))
def _batched_forward(x_batch, vw, vb, ww, wb, *, out):
    """x_batch: (B, inp) float32 — batch of averaged-embedding vectors."""
    b, inp = x_batch.shape
    hid = vw.shape[1]

    # Batch tile: multiple of 8 sublanes; 128 rows fills a native MXU tile
    # (a multiple of 256 would be even better on v6e/v7x for very large batches).
    tb = 128 if b >= 128 else ((b + 7) // 8) * 8
    b_pad = ((b + tb - 1) // tb) * tb
    xp = jnp.zeros((b_pad, inp), jnp.float32).at[:b].set(x_batch.astype(jnp.float32))

    res = pl.pallas_call(
        _nsc_kernel,
        out_shape=jax.ShapeDtypeStruct((b_pad, OUT_PAD), jnp.float32),
        grid=(b_pad // tb,),
        in_specs=[
            pl.BlockSpec((tb, inp), lambda i: (i, 0)),        # x tile moves with grid
            pl.BlockSpec((inp, hid), lambda i: (0, 0)),       # weights stay resident
            pl.BlockSpec((1, hid), lambda i: (0, 0)),
            pl.BlockSpec((hid, OUT_PAD), lambda i: (0, 0)),
            pl.BlockSpec((1, OUT_PAD), lambda i: (0, 0)),
        ],
        out_specs=pl.BlockSpec((tb, OUT_PAD), lambda i: (i, 0)),
        compiler_params=pltpu.CompilerParams(
            dimension_semantics=("parallel",)),
    )(xp, vw, vb, ww, wb)
    return res[:b, :out]


def neural_sentiment_forward_batch(x_batch, params):
    """Batched forward: (B, inp) -> (B, out) log-probabilities."""
    return _batched_forward(x_batch, params["vw"], params["vb"],
                            params["ww"], params["wb"], out=params["out"])


def neural_sentiment_forward(x, params):
    """Single-example forward (matches the module's [inp] -> [out] signature)."""
    return neural_sentiment_forward_batch(x.reshape(1, -1), params)[0]


def _kaiming_uniform(key, fan_out, fan_in):
    # Matches nn.init.kaiming_uniform_ defaults (a=0 -> gain=sqrt(2), mode='fan_in').
    bound = math.sqrt(2.0) * math.sqrt(3.0 / fan_in)
    return jax.random.uniform(key, (fan_out, fan_in), jnp.float32, -bound, bound)


def _linear_bias(key, fan_out, fan_in):
    # nn.Linear default bias init: U(-1/sqrt(fan_in), 1/sqrt(fan_in))
    bound = 1.0 / math.sqrt(fan_in)
    return jax.random.uniform(key, (fan_out,), jnp.float32, -bound, bound)


def _reference_forward_batch(x, v_w, v_b, w_w, w_b):
    h = jnp.maximum(x @ v_w.T + v_b, 0.0)
    logits = h @ w_w.T + w_b
    return jax.nn.log_softmax(logits, axis=-1)


if __name__ == "__main__":
    # Small shapes consistent with the module: inp = embedding length,
    # hid = hidden size, out = number of classes (binary sentiment).
    INP, HID, OUT, BATCH = 32, 32, 2, 8

    key = jax.random.PRNGKey(0)
    k_x, k_vw, k_vb, k_ww, k_wb = jax.random.split(key, 5)

    # x plays the role of form_input(): averaged embedding vectors (batched).
    x_batch = jax.random.normal(k_x, (BATCH, INP), jnp.float32)

    v_w = _kaiming_uniform(k_vw, HID, INP)   # V.weight (hid, inp)
    v_b = _linear_bias(k_vb, HID, INP)       # V.bias   (hid,)
    w_w = _kaiming_uniform(k_ww, OUT, HID)   # W.weight (out, hid)
    w_b = _linear_bias(k_wb, OUT, HID)       # W.bias   (out,)

    params = prepare_params(v_w, v_b, w_w, w_b)

    # Batched path (predict_all-style).
    log_probs = neural_sentiment_forward_batch(x_batch, params)
    jax.block_until_ready(log_probs)
    ref = _reference_forward_batch(x_batch, v_w, v_b, w_w, w_b)
    assert log_probs.shape == (BATCH, OUT)
    assert jnp.allclose(log_probs, ref, atol=1e-5, rtol=1e-5), (log_probs, ref)

    # Single-example path (predict-style).
    lp1 = neural_sentiment_forward(x_batch[0], params)
    jax.block_until_ready(lp1)
    assert lp1.shape == (OUT,)
    assert jnp.allclose(lp1, ref[0], atol=1e-5, rtol=1e-5), (lp1, ref[0])

    # prediction = argmax(log_probs), as in NeuralSentimentClassifier.predict
    _preds = jnp.argmax(log_probs, axis=-1)
    _ = int(_preds[0])

    print("KERNEL_OK")
</pallas_src>

<mosaic_0001>
module attributes {stable_mosaic.version = 11 : i64} {
  func.func @_nsc_kernel(%arg0: i32, %arg1: memref<8x32xf32, #tpu.memory_space<vmem>>, %arg2: memref<32x32xf32, #tpu.memory_space<vmem>>, %arg3: memref<1x32xf32, #tpu.memory_space<vmem>>, %arg4: memref<32x128xf32, #tpu.memory_space<vmem>>, %arg5: memref<1x128xf32, #tpu.memory_space<vmem>>, %arg6: memref<8x128xf32, #tpu.memory_space<vmem>>) attributes {dimension_semantics = [#tpu.dimension_semantics<parallel>], iteration_bounds = array<i64: 1>, scalar_prefetch = 0 : i64, scratch_operands = 0 : i64, tpu.core_type = #tpu.core_type<tc>, window_params = [{transform_indices = @transform_0, window_bounds = array<i64: 8, 32>}, {pipeline_mode = #tpu.pipeline_mode<synchronous>, transform_indices = @transform_1, window_bounds = array<i64: 32, 32>}, {pipeline_mode = #tpu.pipeline_mode<synchronous>, transform_indices = @transform_2, window_bounds = array<i64: 1, 32>}, {pipeline_mode = #tpu.pipeline_mode<synchronous>, transform_indices = @transform_3, window_bounds = array<i64: 32, 128>}, {pipeline_mode = #tpu.pipeline_mode<synchronous>, transform_indices = @transform_4, window_bounds = array<i64: 1, 128>}, {transform_indices = @transform_5, window_bounds = array<i64: 8, 128>}]} {
    %c0 = arith.constant 0 : index
    %c0_0 = arith.constant 0 : index
    %0 = vector.load %arg1[%c0, %c0_0] : memref<8x32xf32, #tpu.memory_space<vmem>>, vector<8x32xf32>
    %c0_1 = arith.constant 0 : index
    %c0_2 = arith.constant 0 : index
    %1 = vector.load %arg2[%c0_1, %c0_2] : memref<32x32xf32, #tpu.memory_space<vmem>>, vector<32x32xf32>
    %cst = arith.constant dense<0.000000e+00> : vector<8x32xf32>
    %2 = tpu.matmul %0, %1, %cst {dimension_numbers = #tpu.dot_dimension_numbers<[1], [0], [0], [1], [0, 0, 1, 1], [], []>} : vector<8x32xf32>, vector<32x32xf32>, vector<8x32xf32> -> vector<8x32xf32>
    %c0_3 = arith.constant 0 : index
    %c0_4 = arith.constant 0 : index
    %3 = vector.load %arg3[%c0_3, %c0_4] : memref<1x32xf32, #tpu.memory_space<vmem>>, vector<1x32xf32>
    %4 = vector.broadcast %3 : vector<1x32xf32> to vector<8x32xf32>
    %5 = arith.addf %2, %4 : vector<8x32xf32>
    %cst_5 = arith.constant 0.000000e+00 : f32
    %6 = vector.broadcast %cst_5 : f32 to vector<8x32xf32>
    %7 = arith.maximumf %5, %6 : vector<8x32xf32>
    %c0_6 = arith.constant 0 : index
    %c0_7 = arith.constant 0 : index
    %8 = vector.load %arg4[%c0_6, %c0_7] : memref<32x128xf32, #tpu.memory_space<vmem>>, vector<32x128xf32>
    %cst_8 = arith.constant dense<0.000000e+00> : vector<8x128xf32>
    %9 = tpu.matmul %7, %8, %cst_8 {dimension_numbers = #tpu.dot_dimension_numbers<[1], [0], [0], [1], [0, 0, 1, 1], [], []>} : vector<8x32xf32>, vector<32x128xf32>, vector<8x128xf32> -> vector<8x128xf32>
    %c0_9 = arith.constant 0 : index
    %c0_10 = arith.constant 0 : index
    %10 = vector.load %arg5[%c0_9, %c0_10] : memref<1x128xf32, #tpu.memory_space<vmem>>, vector<1x128xf32>
    %11 = vector.broadcast %10 : vector<1x128xf32> to vector<8x128xf32>
    %12 = arith.addf %9, %11 : vector<8x128xf32>
    %cst_11 = arith.constant dense<0xFF800000> : vector<8xf32>
    %13 = vector.multi_reduction <maximumf>, %12, %cst_11 [1] : vector<8x128xf32> to vector<8xf32>
    %14 = vector.shape_cast %13 : vector<8xf32> to vector<8x1xf32>
    %15 = vector.broadcast %14 : vector<8x1xf32> to vector<8x128xf32>
    %16 = arith.subf %12, %15 : vector<8x128xf32>
    %17 = math.exp %16 : vector<8x128xf32>
    %cst_12 = arith.constant dense<0.000000e+00> : vector<8xf32>
    %18 = vector.multi_reduction <add>, %17, %cst_12 [1] : vector<8x128xf32> to vector<8xf32>
    %19 = vector.shape_cast %18 : vector<8xf32> to vector<8x1xf32>
    %20 = math.log %19 : vector<8x1xf32>
    %21 = vector.broadcast %20 : vector<8x1xf32> to vector<8x128xf32>
    %22 = arith.subf %16, %21 : vector<8x128xf32>
    %c0_13 = arith.constant 0 : index
    %c0_14 = arith.constant 0 : index
    %23 = vector.load %arg6[%c0_13, %c0_14] : memref<8x128xf32, #tpu.memory_space<vmem>>, vector<8x128xf32>
    tpu.vector_store %arg6[%c0_13, %c0_14], %22 {strides = array<i32>} : memref<8x128xf32, #tpu.memory_space<vmem>>, vector<8x128xf32>,
    return
  }
  func.func @transform_0(%arg0: i32) -> (i32, i32) {
    %c0_i32 = arith.constant 0 : i32
    %c0_i32_0 = arith.constant 0 : i32
    return %arg0, %c0_i32 : i32, i32
  }
  func.func @transform_1(%arg0: i32) -> (i32, i32) {
    %c0_i32 = arith.constant 0 : i32
    %c0_i32_0 = arith.constant 0 : i32
    %c0_i32_1 = arith.constant 0 : i32
    return %c0_i32, %c0_i32_0 : i32, i32
  }
  func.func @transform_2(%arg0: i32) -> (i32, i32) {
    %c0_i32 = arith.constant 0 : i32
    %c0_i32_0 = arith.constant 0 : i32
    %c0_i32_1 = arith.constant 0 : i32
    return %c0_i32, %c0_i32_0 : i32, i32
  }
  func.func @transform_3(%arg0: i32) -> (i32, i32) {
    %c0_i32 = arith.constant 0 : i32
    %c0_i32_0 = arith.constant 0 : i32
    %c0_i32_1 = arith.constant 0 : i32
    return %c0_i32, %c0_i32_0 : i32, i32
  }
  func.func @transform_4(%arg0: i32) -> (i32, i32) {
    %c0_i32 = arith.constant 0 : i32
    %c0_i32_0 = arith.constant 0 : i32
    %c0_i32_1 = arith.constant 0 : i32
    return %c0_i32, %c0_i32_0 : i32, i32
  }
  func.func @transform_5(%arg0: i32) -> (i32, i32) {
    %c0_i32 = arith.constant 0 : i32
    %c0_i32_0 = arith.constant 0 : i32
    return %arg0, %c0_i32 : i32, i32
  }
}

</mosaic_0001>

<llo_original>
// kernel: _batched_forward.1
$region0: #{_batched_forward.1}
  #allocation0 [shape = 'u32[]', space=smem, size = 0x4, offset = 0x4, fixed_abs, tag = 'smem constant byte address 0x4 - core index']
  #allocation1 [shape = 'u32[144,128]{1,0:T(1,128)}', space=vmem, size = 0x12000, scoped, tag = 'internal scratch']
  %s0 = inlined_call_operand.hbm [shape: f32[8,32], index: 0, kind: input, shape index: {}]
  %s1 = inlined_call_operand.hbm [shape: f32[32,32], index: 1, kind: input, shape index: {}]
  %s2 = inlined_call_operand.vmem [shape: f32[1,32], index: 2, kind: input, shape index: {}]
  %s3 = inlined_call_operand.hbm [shape: f32[32,128], index: 3, kind: input, shape index: {}]
  %s4 = inlined_call_operand.vmem [shape: f32[1,128], index: 4, kind: input, shape index: {}]
  %s5 = inlined_call_operand.vmem [shape: f32[8,128], index: 5, kind: output, shape index: {}]
  %s6 = sld [smem:[#allocation0]]
  $region42: #{_batched_forward.1} parent=0
    _
  %s8 = ssub.s32 1, %s6
  %s9 = scalar_select 0, %s8, %s6
  $region1: #{_batched_forward.1} parent=0
    #allocation2 [shape = 'u8[4096]{0}', space=vmem, size = 0x1000, scoped, tag = 'input window, operand 0, single buffered']
    #allocation3 [shape = 's32[1]{0}', space=sflag, size = 0x4, scoped, tag = 'scoped memory for _batched_forward.1']
    #allocation4 [shape = 'u8[16384]{0}', space=vmem, size = 0x4000, scoped, tag = 'input window, operand 1, single buffered']
    #allocation5 [shape = 's32[1]{0}', space=sflag, size = 0x4, scoped, tag = 'scoped memory for _batched_forward.1']
    #allocation6 [shape = 'u8[16384]{0}', space=vmem, size = 0x4000, scoped, tag = 'input window, operand 3, single buffered']
    %10 = vsyncpa [#allocation3], 0
    %11 = vsyncpa [#allocation5], 0
    // Predicated region
    $region2: #{_batched_forward.1} parent=1 // pred_check
      _
    $region3: #{_batched_forward.1} parent=1 // pred_check_branch
      %13 = sbr.rel (0) target = $region5
    $region4: #{_batched_forward.1} parent=1 // pred_region
      %s15 = ssub.s32 128, 128
      %16 = vsyncadd [#allocation3], %s15
      %s18 = sshll.u32 [#allocation2], 4
      %s19 = int_to_ptr.vmem [resolvable:$true] %s18
      %21 = dma.hbm_to_vmem [thread:$0]  %s0, 128, %s19, [#allocation3]
    $region5: #{_batched_forward.1} parent=1 // pred_fallthru
      _
    // Predicated region
    $region6: #{_batched_forward.1} parent=1 // pred_check
      _
    $region7: #{_batched_forward.1} parent=1 // pred_check_branch
      %23 = sbr.rel (0) target = $region9
    $region8: #{_batched_forward.1} parent=1 // pred_region
      %s25 = ssub.s32 512, 512
      %26 = vsyncadd [#allocation5], %s25
      %s27 = sshll.u32 [#allocation4], 4
      %s28 = int_to_ptr.vmem [resolvable:$true] %s27
      %33 = dma.hbm_to_vmem [thread:$0]  %s1, 512, %s28, [#allocation5], 128, 128, 8
    $region9: #{_batched_forward.1} parent=1 // pred_fallthru
      _
    // Predicated region
    $region10: #{_batched_forward.1} parent=1 // pred_check
      _
    $region11: #{_batched_forward.1} parent=1 // pred_check_branch
      %35 = sbr.rel (0) target = $region13
    $region12: #{_batched_forward.1} parent=1 // pred_region
      _
    $region13: #{_batched_forward.1} parent=1 // pred_fallthru
      _
    // Predicated region
    $region14: #{_batched_forward.1} parent=1 // pred_check
      _
    $region15: #{_batched_forward.1} parent=1 // pred_check_branch
      %37 = sbr.rel (0) target = $region17
    $region16: #{_batched_forward.1} parent=1 // pred_region
      %s39 = ssub.s32 512, 512
      %40 = vsyncadd [#allocation5], %s39
      %s41 = sshll.u32 [#allocation6], 4
      %s42 = int_to_ptr.vmem [resolvable:$true] %s41
      %47 = dma.hbm_to_vmem [thread:$0]  %s3, 512, %s42, [#allocation5], 128, 128, 8
    $region17: #{_batched_forward.1} parent=1 // pred_fallthru
      _
    // Predicated region
    $region18: #{_batched_forward.1} parent=1 // pred_check
      _
    $region19: #{_batched_forward.1} parent=1 // pred_check_branch
      %49 = sbr.rel (0) target = $region21
    $region20: #{_batched_forward.1} parent=1 // pred_region
      _
    $region21: #{_batched_forward.1} parent=1 // pred_fallthru
      _
    // Predicated region
    $region22: #{_batched_forward.1} parent=1 // pred_check
      _
    $region23: #{_batched_forward.1} parent=1 // pred_check_branch
      %51 = sbr.rel (0) target = $region25
    $region24: #{_batched_forward.1} parent=1 // pred_region
      %52 = dma.done [#allocation3], 128
    $region25: #{_batched_forward.1} parent=1 // pred_fallthru
      _
    // Predicated region
    $region26: #{_batched_forward.1} parent=1 // pred_check
      _
    $region27: #{_batched_forward.1} parent=1 // pred_check_branch
      %54 = sbr.rel (0) target = $region29
    $region28: #{_batched_forward.1} parent=1 // pred_region
      %55 = dma.done [#allocation5], 512
    $region29: #{_batched_forward.1} parent=1 // pred_fallthru
      _
    // Predicated region
    $region30: #{_batched_forward.1} parent=1 // pred_check
      _
    $region31: #{_batched_forward.1} parent=1 // pred_check_branch
      %57 = sbr.rel (0) target = $region33
    $region32: #{_batched_forward.1} parent=1 // pred_region
      %58 = dma.done [#allocation5], 512
    $region33: #{_batched_forward.1} parent=1 // pred_fallthru
      _
    %v59 = vld [vmem:[#allocation2] sm:$0xff]
    %v60 = vld [vmem:[#allocation4] sm:$0xff]
    %v61 = vld [vmem:[#allocation4 + $0x8] sm:$0xff]
    %v62 = vld [vmem:[#allocation4 + $0x10] sm:$0xff]
    %v63 = vld [vmem:[#allocation4 + $0x18] sm:$0xff]
    %v64 = vld [vmem:[%s2] sm:$0x1]
    %v66 = vlaneseq
    %v67 = vshrl.u32 %v66, 7
    %v68 = vsub.s32 0, %v67
    %v69 = vrot.slane %v64, %v68
    %vm71 = vcmask 261120
    %v73 = vsel %vm71, %v59, 0
    %75 = vmatprep.subr.mxu0 0.0
    %76 = vmatpush1.msra.mxu0 %v60
    %77 = vmatprep.subr.mxu0 0.0
    %78 = vmatpush1.msra.mxu0 %v61
    %79 = vmatprep.subr.mxu0 0.0
    %80 = vmatpush1.msra.mxu0 %v62
    %81 = vmatprep.subr.mxu0 0.0
    %82 = vmatpush1.msra.mxu0 %v63
    %83 = vmatprep.subr.mxu0 0.0
    %84 = vmatpush1.msra.mxu0 0.0
    %85 = vmatprep.subr.mxu0 0.0
    %86 = vmatpush1.msra.mxu0 0.0
    %87 = vmatprep.subr.mxu0 0.0
    %88 = vmatpush1.msra.mxu0 0.0
    %89 = vmatprep.subr.mxu0 0.0
    %90 = vmatpush1.msra.mxu0 0.0
    %91 = vmatprep.subr.mxu0 0.0
    %92 = vmatpush1.msra.mxu0 0.0
    %93 = vmatprep.subr.mxu0 0.0
    %94 = vmatpush1.msra.mxu0 0.0
    %95 = vmatprep.subr.mxu0 0.0
    %96 = vmatpush1.msra.mxu0 0.0
    %97 = vmatprep.subr.mxu0 0.0
    %98 = vmatpush1.msra.mxu0 0.0
    %99 = vmatprep.subr.mxu0 0.0
    %100 = vmatpush1.msra.mxu0 0.0
    %101 = vmatprep.subr.mxu0 0.0
    %102 = vmatpush1.msra.mxu0 0.0
    %103 = vmatprep.subr.mxu0 0.0
    %104 = vmatpush1.msra.mxu0 0.0
    %105 = vmatprep.subr.mxu0 0.0
    %106 = vmatpush1.msra.mxu0 0.0
    %107 = vmatprep.subr.mxu0 0.0
    %108 = vmatpush1.msra.mxu0 0.0
    %109 = vmatprep.subr.mxu0 0.0
    %110 = vmatpush1.msra.mxu0 0.0
    %111 = vmatprep.subr.mxu0 0.0
    %112 = vmatpush1.msra.mxu0 0.0
    %113 = vmatprep.subr.mxu0 0.0
    %114 = vmatpush1.msra.mxu0 0.0
    %115 = vmatprep.subr.mxu0 0.0
    %116 = vmatpush1.msra.mxu0 0.0
    %117 = vmatprep.subr.mxu0 0.0
    %118 = vmatpush1.msra.mxu0 0.0
    %119 = vmatprep.subr.mxu0 0.0
    %120 = vmatpush1.msra.mxu0 0.0
    %121 = vmatprep.subr.mxu0 0.0
    %122 = vmatpush1.msra.mxu0 0.0
    %123 = vmatprep.subr.mxu0 0.0
    %124 = vmatpush1.msra.mxu0 0.0
    %125 = vmatprep.subr.mxu0 0.0
    %126 = vmatpush1.msra.mxu0 0.0
    %127 = vmatprep.subr.mxu0 0.0
    %128 = vmatpush1.msra.mxu0 0.0
    %129 = vmatprep.subr.mxu0 0.0
    %130 = vmatpush1.msra.mxu0 0.0
    %131 = vmatprep.subr.mxu0 0.0
    %132 = vmatpush1.msra.mxu0 0.0
    %133 = vmatprep.subr.mxu0 0.0
    %134 = vmatpush1.msra.mxu0 0.0
    %135 = vmatprep.subr.mxu0 0.0
    %136 = vmatpush1.msra.mxu0 0.0
    %137 = vmatprep.subr.mxu0 0.0
    %138 = vmatpush1.msra.mxu0 0.0
    %139 = vmatprep.mubr.f32.mxu0 0.0
    %140 = vmatmul.mubr.f32.gmra.mrb[0].mxu0 %v73
    %v141 = vpop.f32.mrb[0].mxu0
    %v142 = vadd.f32 %v69, %v141
    %v143 = vpop.f32.mrb[0].mxu0
    %144 = vdwg.mxu0
    %v145 = vmax.f32 %v142, 0.0
    %v146 = vld [vmem:[#allocation6] sm:$0xff]
    %v147 = vld [vmem:[#allocation6 + $0x8] sm:$0xff]
    %v148 = vld [vmem:[#allocation6 + $0x10] sm:$0xff]
    %v149 = vld [vmem:[#allocation6 + $0x18] sm:$0xff]
    %v150 = vld [vmem:[%s4] sm:$0x1]
    %v152 = vlaneseq
    %v153 = vshrl.u32 %v152, 7
    %v154 = vsub.s32 0, %v153
    %v155 = vrot.slane %v150, %v154
    %v158 = vsel %vm71, %v145, 0
    %160 = vmatprep.subr.mxu0 0.0
    %161 = vmatpush1.msra.mxu0 %v146
    %162 = vmatprep.subr.mxu0 0.0
    %163 = vmatpush1.msra.mxu0 %v147
    %164 = vmatprep.subr.mxu0 0.0
    %165 = vmatpush1.msra.mxu0 %v148
    %166 = vmatprep.subr.mxu0 0.0
    %167 = vmatpush1.msra.mxu0 %v149
    %168 = vmatprep.subr.mxu0 0.0
    %169 = vmatpush1.msra.mxu0 0.0
    %170 = vmatprep.subr.mxu0 0.0
    %171 = vmatpush1.msra.mxu0 0.0
    %172 = vmatprep.subr.mxu0 0.0
    %173 = vmatpush1.msra.mxu0 0.0
    %174 = vmatprep.subr.mxu0 0.0
    %175 = vmatpush1.msra.mxu0 0.0
    %176 = vmatprep.subr.mxu0 0.0
    %177 = vmatpush1.msra.mxu0 0.0
    %178 = vmatprep.subr.mxu0 0.0
    %179 = vmatpush1.msra.mxu0 0.0
    %180 = vmatprep.subr.mxu0 0.0
    %181 = vmatpush1.msra.mxu0 0.0
    %182 = vmatprep.subr.mxu0 0.0
    %183 = vmatpush1.msra.mxu0 0.0
    %184 = vmatprep.subr.mxu0 0.0
    %185 = vmatpush1.msra.mxu0 0.0
    %186 = vmatprep.subr.mxu0 0.0
    %187 = vmatpush1.msra.mxu0 0.0
    %188 = vmatprep.subr.mxu0 0.0
    %189 = vmatpush1.msra.mxu0 0.0
    %190 = vmatprep.subr.mxu0 0.0
    %191 = vmatpush1.msra.mxu0 0.0
    %192 = vmatprep.subr.mxu0 0.0
    %193 = vmatpush1.msra.mxu0 0.0
    %194 = vmatprep.subr.mxu0 0.0
    %195 = vmatpush1.msra.mxu0 0.0
    %196 = vmatprep.subr.mxu0 0.0
    %197 = vmatpush1.msra.mxu0 0.0
    %198 = vmatprep.subr.mxu0 0.0
    %199 = vmatpush1.msra.mxu0 0.0
    %200 = vmatprep.subr.mxu0 0.0
    %201 = vmatpush1.msra.mxu0 0.0
    %202 = vmatprep.subr.mxu0 0.0
    %203 = vmatpush1.msra.mxu0 0.0
    %204 = vmatprep.subr.mxu0 0.0
    %205 = vmatpush1.msra.mxu0 0.0
    %206 = vmatprep.subr.mxu0 0.0
    %207 = vmatpush1.msra.mxu0 0.0
    %208 = vmatprep.subr.mxu0 0.0
    %209 = vmatpush1.msra.mxu0 0.0
    %210 = vmatprep.subr.mxu0 0.0
    %211 = vmatpush1.msra.mxu0 0.0
    %212 = vmatprep.subr.mxu0 0.0
    %213 = vmatpush1.msra.mxu0 0.0
    %214 = vmatprep.subr.mxu0 0.0
    %215 = vmatpush1.msra.mxu0 0.0
    %216 = vmatprep.subr.mxu0 0.0
    %217 = vmatpush1.msra.mxu0 0.0
    %218 = vmatprep.subr.mxu0 0.0
    %219 = vmatpush1.msra.mxu0 0.0
    %220 = vmatprep.subr.mxu0 0.0
    %221 = vmatpush1.msra.mxu0 0.0
    %222 = vmatprep.subr.mxu0 0.0
    %223 = vmatpush1.msra.mxu0 0.0
    %224 = vmatprep.mubr.f32.mxu0 0.0
    %225 = vmatmul.mubr.f32.gmra.mrb[0].mxu0 %v158
    %v226 = vpop.f32.mrb[0].mxu0
    %v227 = vadd.f32 %v155, %v226
    %v228 = vpop.f32.mrb[0].mxu0
    %229 = vdwg.mxu0
    %230 = vmax.xlane.f32.xlu0 %v227
    %v231 = vpop.xlane.xlu0 %230
    %v232 = vsub.f32 %v227, %v231
    %v233 = vmul.f32 %v232, 1.442695
    %v234 = vpow.pop %v233
    %235 = vadd.xlane.f32.xlu0 %v234
    %v236 = vpop.xlane.xlu0 %235
    %v237 = vlog2.pop %v236
    %v238 = vmul.f32 %v237, 0.6931472
    %v239 = vsub.f32 %v232, %v238
    %240 = vst [vmem:[%s5] sm:$0xff] %v239
    // Predicated region
    $region34: #{_batched_forward.1} parent=1 // pred_check
      _
    $region35: #{_batched_forward.1} parent=1 // pred_check_branch
      %242 = sbr.rel (0) target = $region37
    $region36: #{_batched_forward.1} parent=1 // pred_region
      _
    $region37: #{_batched_forward.1} parent=1 // pred_fallthru
      _
    // Predicated region
    $region38: #{_batched_forward.1} parent=1 // pred_check
      _
    $region39: #{_batched_forward.1} parent=1 // pred_check_branch
      %244 = sbr.rel (0) target = $region41
    $region40: #{_batched_forward.1} parent=1 // pred_region
      _
    $region41: #{_batched_forward.1} parent=1 // pred_fallthru
      _
    %245 = vsyncpa [#allocation3], 1
    %246 = vsyncpa [#allocation5], 1

</llo_original>
